<compile_context>
chip_gen: v7x
topology: tpu7x:2x2x1
jax: 0.10.0
libtpu: 0.0.40
codegen_flags: <defaults>
</compile_context>

<pallas_src>
import jax
import jax.numpy as jnp
from jax import lax
from jax.experimental import pallas as pl
from jax.experimental.pallas import tpu as pltpu


def linear_add_kernel(other_ref, x_ref, w_ref, o_ref):
    # other_ref: (1,1) scalar in SMEM; x_ref: (M,K); w_ref: (N,K); o_ref: (M,N)
    acc = lax.dot_general(
        x_ref[...],
        w_ref[...],
        dimension_numbers=(((1,), (1,)), ((), ())),   # contract K of x with K of w
        preferred_element_type=jnp.float32,
    )
    o_ref[...] = (acc + other_ref[0, 0]).astype(o_ref.dtype)


def linear_add(x, w_nk, other_scalar):
    """out = x @ w_nk.T + other  (w_nk is (out_features, in_features))."""
    M, K = x.shape
    N, Kw = w_nk.shape
    assert K == Kw
    other_arr = jnp.asarray(other_scalar, dtype=jnp.float32).reshape(1, 1)
    return pl.pallas_call(
        linear_add_kernel,
        out_shape=jax.ShapeDtypeStruct((M, N), jnp.float32),
        in_specs=[
            pl.BlockSpec(memory_space=pltpu.SMEM),   # other scalar (1,1)
            pl.BlockSpec(memory_space=pltpu.VMEM),   # x, full array
            pl.BlockSpec(memory_space=pltpu.VMEM),   # weight (N,K), full array
        ],
        out_specs=pl.BlockSpec(memory_space=pltpu.VMEM),
    )(other_arr, x, w_nk)


if __name__ == "__main__":
    key = jax.random.PRNGKey(0)
    kx, kw = jax.random.split(key)

    M, K, N = 8, 1584, 43          # batch=8, in_features=1584, out_features=43
    other = 1                      # matches `other = 1` in the PyTorch script

    x1 = jax.random.normal(kx, (M, K), dtype=jnp.float32)
    # torch.nn.Linear weight is (out, in) = (43, 1584) — keep that orientation.
    bound = 1.0 / (K ** 0.5)
    w_nk = jax.random.uniform(kw, (N, K), dtype=jnp.float32,
                              minval=-bound, maxval=bound)

    out = linear_add(x1, w_nk, other)
    jax.block_until_ready(out)

    # reference check in plain JAX
    ref = x1 @ w_nk.T + other
    assert out.shape == (M, N)
    assert jnp.allclose(out, ref, atol=1e-4, rtol=1e-4)
    print("KERNEL_OK")
</pallas_src>

<mosaic_0001>
module attributes {stable_mosaic.version = 11 : i64} {
  func.func @linear_add_kernel(%arg0: memref<1x1xf32, #tpu.memory_space<smem>>, %arg1: memref<8x1584xf32, #tpu.memory_space<vmem>>, %arg2: memref<43x1584xf32, #tpu.memory_space<vmem>>, %arg3: memref<8x43xf32, #tpu.memory_space<vmem>>) attributes {dimension_semantics = [], scalar_prefetch = 0 : i64, scratch_operands = 0 : i64, tpu.core_type = #tpu.core_type<tc>} {
    %c0 = arith.constant 0 : index
    %c0_0 = arith.constant 0 : index
    %0 = vector.load %arg1[%c0, %c0_0] : memref<8x1584xf32, #tpu.memory_space<vmem>>, vector<8x1584xf32>
    %c0_1 = arith.constant 0 : index
    %c0_2 = arith.constant 0 : index
    %1 = vector.load %arg2[%c0_1, %c0_2] : memref<43x1584xf32, #tpu.memory_space<vmem>>, vector<43x1584xf32>
    %cst = arith.constant dense<0.000000e+00> : vector<8x43xf32>
    %2 = tpu.matmul %0, %1, %cst {dimension_numbers = #tpu.dot_dimension_numbers<[1], [1], [0], [0], [0, 0, 1, 0], [], []>} : vector<8x1584xf32>, vector<43x1584xf32>, vector<8x43xf32> -> vector<8x43xf32>
    %c0_3 = arith.constant 0 : index
    %c0_4 = arith.constant 0 : index
    %3 = memref.load %arg0[%c0_3, %c0_4] : memref<1x1xf32, #tpu.memory_space<smem>>
    %4 = vector.broadcast %3 : f32 to vector<8x43xf32>
    %5 = arith.addf %2, %4 : vector<8x43xf32>
    %c0_5 = arith.constant 0 : index
    %c0_6 = arith.constant 0 : index
    %6 = vector.load %arg3[%c0_5, %c0_6] : memref<8x43xf32, #tpu.memory_space<vmem>>, vector<8x43xf32>
    tpu.vector_store %arg3[%c0_5, %c0_6], %5 {strides = array<i32>} : memref<8x43xf32, #tpu.memory_space<vmem>>, vector<8x43xf32>,
    return
  }
}

</mosaic_0001>

<llo_original>
// kernel: tpu_custom_call.1
$region0: #{tpu_custom_call.1}
  #allocation0 [shape = 'u32[]', space=smem, size = 0x4, offset = 0x4, fixed_abs, tag = 'smem constant byte address 0x4 - core index']
  #allocation1 [shape = 'u32[144,128]{1,0:T(1,128)}', space=vmem, size = 0x12000, scoped, tag = 'internal scratch']
  #allocation2 [shape = 'f32[1,1]{1,0:T(1,128)S(6)}', space=smem, size = 0x200, scoped, tag = 'scoped memory for tpu_custom_call.1']
  %s0 = inlined_call_operand.<no memory space> [shape: f32[1,1], index: 0, kind: input, shape index: {}]
  %s1 = inlined_call_operand.hbm [shape: f32[8,1584], index: 1, kind: input, shape index: {}]
  %s2 = inlined_call_operand.hbm [shape: f32[43,1584], index: 2, kind: input, shape index: {}]
  %s3 = inlined_call_operand.hbm [shape: f32[8,43], index: 3, kind: output, shape index: {}]
  %s4 = sld [smem:[#allocation0]]
  $region30: #{tpu_custom_call.1} parent=0
    _
  %s6 = ssub.s32 1, %s4
  %s7 = scalar_select 0, %s6, %s4
  %8 = sst [smem:[#allocation2]] %s0
  $region1: #{tpu_custom_call.1} parent=0
    #allocation3 [shape = 'u8[53248]{0}', space=vmem, size = 0xd000, scoped, tag = 'input window, operand 1, single buffered']
    #allocation4 [shape = 's32[1]{0}', space=sflag, size = 0x4, scoped, tag = 'scoped memory for tpu_custom_call.1']
    #allocation5 [shape = 's32[1]{0}', space=sflag, size = 0x4, scoped, tag = 'scoped memory for tpu_custom_call.1']
    #allocation6 [shape = 'u8[319488]{0}', space=vmem, size = 0x4e000, scoped, tag = 'input window, operand 2, single buffered']
    #allocation7 [shape = 's32[1]{0}', space=sflag, size = 0x4, scoped, tag = 'scoped memory for tpu_custom_call.1']
    #allocation8 [shape = 'u8[4096]{0}', space=vmem, size = 0x1000, scoped, tag = 'output window, operand 0, single buffered']
    %9 = vsyncpa [#allocation4], 0
    %10 = vsyncpa [#allocation7], 0
    %11 = vsyncpa [#allocation5], 0
    // Predicated region
    $region2: #{tpu_custom_call.1} parent=1 // pred_check
      _
    $region3: #{tpu_custom_call.1} parent=1 // pred_check_branch
      %13 = sbr.rel (0) target = $region5
    $region4: #{tpu_custom_call.1} parent=1 // pred_region
      _
    $region5: #{tpu_custom_call.1} parent=1 // pred_fallthru
      _
    // Predicated region
    $region6: #{tpu_custom_call.1} parent=1 // pred_check
      _
    $region7: #{tpu_custom_call.1} parent=1 // pred_check_branch
      %15 = sbr.rel (0) target = $region9
    $region8: #{tpu_custom_call.1} parent=1 // pred_region
      %s17 = ssub.s32 1664, 1664
      %18 = vsyncadd [#allocation4], %s17
      %s20 = sshll.u32 [#allocation3], 4
      %s21 = int_to_ptr.vmem [resolvable:$true] %s20
      %23 = dma.hbm_to_vmem [thread:$0]  %s1, 1664, %s21, [#allocation4]
    $region9: #{tpu_custom_call.1} parent=1 // pred_fallthru
      _
    // Predicated region
    $region10: #{tpu_custom_call.1} parent=1 // pred_check
      _
    $region11: #{tpu_custom_call.1} parent=1 // pred_check_branch
      %25 = sbr.rel (0) target = $region13
    $region12: #{tpu_custom_call.1} parent=1 // pred_region
      %s27 = ssub.s32 9984, 9984
      %28 = vsyncadd [#allocation7], %s27
      %s29 = sshll.u32 [#allocation6], 4
      %s30 = int_to_ptr.vmem [resolvable:$true] %s29
      %35 = dma.hbm_to_vmem [thread:$0]  %s2, 9984, %s30, [#allocation7], 1664, 1664, 104
    $region13: #{tpu_custom_call.1} parent=1 // pred_fallthru
      _
    // Predicated region
    $region14: #{tpu_custom_call.1} parent=1 // pred_check
      _
    $region15: #{tpu_custom_call.1} parent=1 // pred_check_branch
      %37 = sbr.rel (0) target = $region17
    $region16: #{tpu_custom_call.1} parent=1 // pred_region
      %38 = dma.done [#allocation4], 1664
    $region17: #{tpu_custom_call.1} parent=1 // pred_fallthru
      _
    // Predicated region
    $region18: #{tpu_custom_call.1} parent=1 // pred_check
      _
    $region19: #{tpu_custom_call.1} parent=1 // pred_check_branch
      %40 = sbr.rel (0) target = $region21
    $region20: #{tpu_custom_call.1} parent=1 // pred_region
      %41 = dma.done [#allocation7], 9984
    $region21: #{tpu_custom_call.1} parent=1 // pred_fallthru
      _
    %v42 = vld [vmem:[#allocation3] sm:$0xff]
    %v43 = vld [vmem:[#allocation3 + $0x8] sm:$0xff]
    %v44 = vld [vmem:[#allocation3 + $0x10] sm:$0xff]
    %v45 = vld [vmem:[#allocation3 + $0x18] sm:$0xff]
    %v46 = vld [vmem:[#allocation3 + $0x20] sm:$0xff]
    %v47 = vld [vmem:[#allocation3 + $0x28] sm:$0xff]
    %v48 = vld [vmem:[#allocation3 + $0x30] sm:$0xff]
    %v49 = vld [vmem:[#allocation3 + $0x38] sm:$0xff]
    %v50 = vld [vmem:[#allocation3 + $0x40] sm:$0xff]
    %v51 = vld [vmem:[#allocation3 + $0x48] sm:$0xff]
    %v52 = vld [vmem:[#allocation3 + $0x50] sm:$0xff]
    %v53 = vld [vmem:[#allocation3 + $0x58] sm:$0xff]
    %v54 = vld [vmem:[#allocation3 + $0x60] sm:$0xff]
    %v55 = vld [vmem:[#allocation6] sm:$0xff]
    %v56 = vld [vmem:[#allocation6 + $0x8] sm:$0xff]
    %v57 = vld [vmem:[#allocation6 + $0x10] sm:$0xff]
    %v58 = vld [vmem:[#allocation6 + $0x18] sm:$0xff]
    %v59 = vld [vmem:[#allocation6 + $0x20] sm:$0xff]
    %v60 = vld [vmem:[#allocation6 + $0x28] sm:$0xff]
    %v61 = vld [vmem:[#allocation6 + $0x30] sm:$0xff]
    %v62 = vld [vmem:[#allocation6 + $0x38] sm:$0xff]
    %v63 = vld [vmem:[#allocation6 + $0x40] sm:$0xff]
    %v64 = vld [vmem:[#allocation6 + $0x48] sm:$0xff]
    %v65 = vld [vmem:[#allocation6 + $0x50] sm:$0xff]
    %v66 = vld [vmem:[#allocation6 + $0x58] sm:$0xff]
    %v67 = vld [vmem:[#allocation6 + $0x60] sm:$0xff]
    %v68 = vld [vmem:[#allocation6 + $0x68] sm:$0xff]
    %v69 = vld [vmem:[#allocation6 + $0x70] sm:$0xff]
    %v70 = vld [vmem:[#allocation6 + $0x78] sm:$0xff]
    %v71 = vld [vmem:[#allocation6 + $0x80] sm:$0xff]
    %v72 = vld [vmem:[#allocation6 + $0x88] sm:$0xff]
    %v73 = vld [vmem:[#allocation6 + $0x90] sm:$0xff]
    %v74 = vld [vmem:[#allocation6 + $0x98] sm:$0xff]
    %v75 = vld [vmem:[#allocation6 + $0xa0] sm:$0xff]
    %v76 = vld [vmem:[#allocation6 + $0xa8] sm:$0xff]
    %v77 = vld [vmem:[#allocation6 + $0xb0] sm:$0xff]
    %v78 = vld [vmem:[#allocation6 + $0xb8] sm:$0xff]
    %v79 = vld [vmem:[#allocation6 + $0xc0] sm:$0xff]
    %v80 = vld [vmem:[#allocation6 + $0xc8] sm:$0xff]
    %v81 = vld [vmem:[#allocation6 + $0xd0] sm:$0xff]
    %v82 = vld [vmem:[#allocation6 + $0xd8] sm:$0xff]
    %v83 = vld [vmem:[#allocation6 + $0xe0] sm:$0xff]
    %v84 = vld [vmem:[#allocation6 + $0xe8] sm:$0xff]
    %v85 = vld [vmem:[#allocation6 + $0xf0] sm:$0xff]
    %v86 = vld [vmem:[#allocation6 + $0xf8] sm:$0xff]
    %v87 = vld [vmem:[#allocation6 + $0x100] sm:$0xff]
    %v88 = vld [vmem:[#allocation6 + $0x108] sm:$0xff]
    %v89 = vld [vmem:[#allocation6 + $0x110] sm:$0xff]
    %v90 = vld [vmem:[#allocation6 + $0x118] sm:$0xff]
    %v91 = vld [vmem:[#allocation6 + $0x120] sm:$0xff]
    %v92 = vld [vmem:[#allocation6 + $0x128] sm:$0xff]
    %v93 = vld [vmem:[#allocation6 + $0x130] sm:$0xff]
    %v94 = vld [vmem:[#allocation6 + $0x138] sm:$0xff]
    %v95 = vld [vmem:[#allocation6 + $0x140] sm:$0xff]
    %v96 = vld [vmem:[#allocation6 + $0x148] sm:$0xff]
    %v97 = vld [vmem:[#allocation6 + $0x150] sm:$0xff]
    %v98 = vld [vmem:[#allocation6 + $0x158] sm:$0xff]
    %v99 = vld [vmem:[#allocation6 + $0x160] sm:$0xff]
    %v100 = vld [vmem:[#allocation6 + $0x168] sm:$0xff]
    %v101 = vld [vmem:[#allocation6 + $0x170] sm:$0xff]
    %v102 = vld [vmem:[#allocation6 + $0x178] sm:$0xff]
    %v103 = vld [vmem:[#allocation6 + $0x180] sm:$0xff]
    %v104 = vld [vmem:[#allocation6 + $0x188] sm:$0xff]
    %v105 = vld [vmem:[#allocation6 + $0x190] sm:$0xff]
    %v106 = vld [vmem:[#allocation6 + $0x198] sm:$0xff]
    %v107 = vld [vmem:[#allocation6 + $0x1a0] sm:$0xff]
    %v108 = vld [vmem:[#allocation6 + $0x1a8] sm:$0xff]
    %v109 = vld [vmem:[#allocation6 + $0x1b0] sm:$0xff]
    %v110 = vld [vmem:[#allocation6 + $0x1b8] sm:$0xff]
    %v111 = vld [vmem:[#allocation6 + $0x1c0] sm:$0xff]
    %v112 = vld [vmem:[#allocation6 + $0x1c8] sm:$0xff]
    %v113 = vld [vmem:[#allocation6 + $0x1d0] sm:$0xff]
    %v114 = vld [vmem:[#allocation6 + $0x1d8] sm:$0xff]
    %v115 = vld [vmem:[#allocation6 + $0x1e0] sm:$0xff]
    %v116 = vld [vmem:[#allocation6 + $0x1e8] sm:$0xff]
    %v117 = vld [vmem:[#allocation6 + $0x1f0] sm:$0xff]
    %v118 = vld [vmem:[#allocation6 + $0x1f8] sm:$0xff]
    %v119 = vld [vmem:[#allocation6 + $0x200] sm:$0xff]
    %v120 = vld [vmem:[#allocation6 + $0x208] sm:$0x7]
    %v121 = vld [vmem:[#allocation6 + $0x210] sm:$0x7]
    %v122 = vld [vmem:[#allocation6 + $0x218] sm:$0x7]
    %v123 = vld [vmem:[#allocation6 + $0x220] sm:$0x7]
    %v124 = vld [vmem:[#allocation6 + $0x228] sm:$0x7]
    %v125 = vld [vmem:[#allocation6 + $0x230] sm:$0x7]
    %v126 = vld [vmem:[#allocation6 + $0x238] sm:$0x7]
    %v127 = vld [vmem:[#allocation6 + $0x240] sm:$0x7]
    %v128 = vld [vmem:[#allocation6 + $0x248] sm:$0x7]
    %v129 = vld [vmem:[#allocation6 + $0x250] sm:$0x7]
    %v130 = vld [vmem:[#allocation6 + $0x258] sm:$0x7]
    %v131 = vld [vmem:[#allocation6 + $0x260] sm:$0x7]
    %v132 = vld [vmem:[#allocation6 + $0x268] sm:$0x7]
    %s133 = sld [smem:[#allocation2]]
    %v134 = vstv %s133
    %vm135 = vcmask 392192
    %v137 = vsel %vm135, %v54, 0
    %v140 = vsel %vm135, %v67, 0
    %v143 = vsel %vm135, %v80, 0
    %v146 = vsel %vm135, %v93, 0
    %v149 = vsel %vm135, %v106, 0
    %v152 = vsel %vm135, %v119, 0
    %v155 = vsel %vm135, %v132, 0
    %157 = vmatprep.subr.mxu0 %v56
    %158 = vmatpush1.xpose.msra.mxu0 %v55
    %159 = vmatprep.subr.mxu0 %v69
    %160 = vmatpush1.xpose.msra.mxu0 %v68
    %161 = vmatprep.subr.mxu0 %v82
    %162 = vmatpush1.xpose.msra.mxu0 %v81
    %163 = vmatprep.subr.mxu0 %v95
    %164 = vmatpush1.xpose.msra.mxu0 %v94
    %165 = vmatprep.subr.mxu0 %v108
    %166 = vmatpush1.xpose.msra.mxu0 %v107
    %167 = vmatprep.subr.mxu0 %v121
    %168 = vmatpush1.xpose.msra.mxu0 %v120
    %169 = vmatprep.subr.mxu0 0.0
    %170 = vmatpush1.xpose.msra.mxu0 0.0
    %171 = vmatprep.subr.mxu0 0.0
    %172 = vmatpush1.xpose.msra.mxu0 0.0
    %173 = vmatprep.subr.mxu0 0.0
    %174 = vmatpush1.xpose.msra.mxu0 0.0
    %175 = vmatprep.subr.mxu0 0.0
    %176 = vmatpush1.xpose.msra.mxu0 0.0
    %177 = vmatprep.subr.mxu0 0.0
    %178 = vmatpush1.xpose.msra.mxu0 0.0
    %179 = vmatprep.subr.mxu0 0.0
    %180 = vmatpush1.xpose.msra.mxu0 0.0
    %181 = vmatprep.subr.mxu0 0.0
    %182 = vmatpush1.xpose.msra.mxu0 0.0
    %183 = vmatprep.subr.mxu0 0.0
    %184 = vmatpush1.xpose.msra.mxu0 0.0
    %185 = vmatprep.subr.mxu0 0.0
    %186 = vmatpush1.xpose.msra.mxu0 0.0
    %187 = vmatprep.subr.mxu0 0.0
    %188 = vmatpush1.xpose.msra.mxu0 0.0
    %189 = vmatprep.subr.mxu0 0.0
    %190 = vmatpush1.xpose.msra.mxu0 0.0
    %191 = vmatprep.subr.mxu0 0.0
    %192 = vmatpush1.xpose.msra.mxu0 0.0
    %193 = vmatprep.subr.mxu0 0.0
    %194 = vmatpush1.xpose.msra.mxu0 0.0
    %195 = vmatprep.subr.mxu0 0.0
    %196 = vmatpush1.xpose.msra.mxu0 0.0
    %197 = vmatprep.subr.mxu0 0.0
    %198 = vmatpush1.xpose.msra.mxu0 0.0
    %199 = vmatprep.subr.mxu0 0.0
    %200 = vmatpush1.xpose.msra.mxu0 0.0
    %201 = vmatprep.subr.mxu0 0.0
    %202 = vmatpush1.xpose.msra.mxu0 0.0
    %203 = vmatprep.subr.mxu0 0.0
    %204 = vmatpush1.xpose.msra.mxu0 0.0
    %205 = vmatprep.subr.mxu0 0.0
    %206 = vmatpush1.xpose.msra.mxu0 0.0
    %207 = vmatprep.subr.mxu0 0.0
    %208 = vmatpush1.xpose.msra.mxu0 0.0
    %209 = vmatprep.subr.mxu0 0.0
    %210 = vmatpush1.xpose.msra.mxu0 0.0
    %211 = vmatprep.subr.mxu0 0.0
    %212 = vmatpush1.xpose.msra.mxu0 0.0
    %213 = vmatprep.subr.mxu0 0.0
    %214 = vmatpush1.xpose.msra.mxu0 0.0
    %215 = vmatprep.subr.mxu0 0.0
    %216 = vmatpush1.xpose.msra.mxu0 0.0
    %217 = vmatprep.subr.mxu0 0.0
    %218 = vmatpush1.xpose.msra.mxu0 0.0
    %219 = vmatprep.subr.mxu0 0.0
    %220 = vmatpush1.xpose.msra.mxu0 0.0
    %221 = vmatprep.mubr.f32.mxu0 %v43
    %222 = vmatmul.mubr.f32.gmra.mrb[0].mxu0 %v42
    %v223 = vpop.f32.mrb[0].mxu0
    %v224 = vadd.f32 %v134, %v223
    %v225 = vpop.f32.mrb[0].mxu0
    %226 = vdwg.mxu0
    %227 = vmatprep.subr.mxu0 %v58
    %228 = vmatpush1.xpose.msra.mxu0 %v57
    %229 = vmatprep.subr.mxu0 %v71
    %230 = vmatpush1.xpose.msra.mxu0 %v70
    %231 = vmatprep.subr.mxu0 %v84
    %232 = vmatpush1.xpose.msra.mxu0 %v83
    %233 = vmatprep.subr.mxu0 %v97
    %234 = vmatpush1.xpose.msra.mxu0 %v96
    %235 = vmatprep.subr.mxu0 %v110
    %236 = vmatpush1.xpose.msra.mxu0 %v109
    %237 = vmatprep.subr.mxu0 %v123
    %238 = vmatpush1.xpose.msra.mxu0 %v122
    %239 = vmatprep.subr.mxu0 0.0
    %240 = vmatpush1.xpose.msra.mxu0 0.0
    %241 = vmatprep.subr.mxu0 0.0
    %242 = vmatpush1.xpose.msra.mxu0 0.0
    %243 = vmatprep.subr.mxu0 0.0
    %244 = vmatpush1.xpose.msra.mxu0 0.0
    %245 = vmatprep.subr.mxu0 0.0
    %246 = vmatpush1.xpose.msra.mxu0 0.0
    %247 = vmatprep.subr.mxu0 0.0
    %248 = vmatpush1.xpose.msra.mxu0 0.0
    %249 = vmatprep.subr.mxu0 0.0
    %250 = vmatpush1.xpose.msra.mxu0 0.0
    %251 = vmatprep.subr.mxu0 0.0
    %252 = vmatpush1.xpose.msra.mxu0 0.0
    %253 = vmatprep.subr.mxu0 0.0
    %254 = vmatpush1.xpose.msra.mxu0 0.0
    %255 = vmatprep.subr.mxu0 0.0
    %256 = vmatpush1.xpose.msra.mxu0 0.0
    %257 = vmatprep.subr.mxu0 0.0
    %258 = vmatpush1.xpose.msra.mxu0 0.0
    %259 = vmatprep.subr.mxu0 0.0
    %260 = vmatpush1.xpose.msra.mxu0 0.0
    %261 = vmatprep.subr.mxu0 0.0
    %262 = vmatpush1.xpose.msra.mxu0 0.0
    %263 = vmatprep.subr.mxu0 0.0
    %264 = vmatpush1.xpose.msra.mxu0 0.0
    %265 = vmatprep.subr.mxu0 0.0
    %266 = vmatpush1.xpose.msra.mxu0 0.0
    %267 = vmatprep.subr.mxu0 0.0
    %268 = vmatpush1.xpose.msra.mxu0 0.0
    %269 = vmatprep.subr.mxu0 0.0
    %270 = vmatpush1.xpose.msra.mxu0 0.0
    %271 = vmatprep.subr.mxu0 0.0
    %272 = vmatpush1.xpose.msra.mxu0 0.0
    %273 = vmatprep.subr.mxu0 0.0
    %274 = vmatpush1.xpose.msra.mxu0 0.0
    %275 = vmatprep.subr.mxu0 0.0
    %276 = vmatpush1.xpose.msra.mxu0 0.0
    %277 = vmatprep.subr.mxu0 0.0
    %278 = vmatpush1.xpose.msra.mxu0 0.0
    %279 = vmatprep.subr.mxu0 0.0
    %280 = vmatpush1.xpose.msra.mxu0 0.0
    %281 = vmatprep.subr.mxu0 0.0
    %282 = vmatpush1.xpose.msra.mxu0 0.0
    %283 = vmatprep.subr.mxu0 0.0
    %284 = vmatpush1.xpose.msra.mxu0 0.0
    %285 = vmatprep.subr.mxu0 0.0
    %286 = vmatpush1.xpose.msra.mxu0 0.0
    %287 = vmatprep.subr.mxu0 0.0
    %288 = vmatpush1.xpose.msra.mxu0 0.0
    %289 = vmatprep.subr.mxu0 0.0
    %290 = vmatpush1.xpose.msra.mxu0 0.0
    %291 = vmatprep.mubr.f32.mxu0 %v45
    %292 = vmatmul.mubr.f32.gmra.mrb[0].mxu0 %v44
    %v293 = vpop.f32.mrb[0].mxu0
    %v294 = vadd.f32 %v224, %v293
    %v295 = vpop.f32.mrb[0].mxu0
    %296 = vdwg.mxu0
    %297 = vmatprep.subr.mxu0 %v60
    %298 = vmatpush1.xpose.msra.mxu0 %v59
    %299 = vmatprep.subr.mxu0 %v73
    %300 = vmatpush1.xpose.msra.mxu0 %v72
    %301 = vmatprep.subr.mxu0 %v86
    %302 = vmatpush1.xpose.msra.mxu0 %v85
    %303 = vmatprep.subr.mxu0 %v99
    %304 = vmatpush1.xpose.msra.mxu0 %v98
    %305 = vmatprep.subr.mxu0 %v112
    %306 = vmatpush1.xpose.msra.mxu0 %v111
    %307 = vmatprep.subr.mxu0 %v125
    %308 = vmatpush1.xpose.msra.mxu0 %v124
    %309 = vmatprep.subr.mxu0 0.0
    %310 = vmatpush1.xpose.msra.mxu0 0.0
    %311 = vmatprep.subr.mxu0 0.0
    %312 = vmatpush1.xpose.msra.mxu0 0.0
    %313 = vmatprep.subr.mxu0 0.0
    %314 = vmatpush1.xpose.msra.mxu0 0.0
    %315 = vmatprep.subr.mxu0 0.0
    %316 = vmatpush1.xpose.msra.mxu0 0.0
    %317 = vmatprep.subr.mxu0 0.0
    %318 = vmatpush1.xpose.msra.mxu0 0.0
    %319 = vmatprep.subr.mxu0 0.0
    %320 = vmatpush1.xpose.msra.mxu0 0.0
    %321 = vmatprep.subr.mxu0 0.0
    %322 = vmatpush1.xpose.msra.mxu0 0.0
    %323 = vmatprep.subr.mxu0 0.0
    %324 = vmatpush1.xpose.msra.mxu0 0.0
    %325 = vmatprep.subr.mxu0 0.0
    %326 = vmatpush1.xpose.msra.mxu0 0.0
    %327 = vmatprep.subr.mxu0 0.0
    %328 = vmatpush1.xpose.msra.mxu0 0.0
    %329 = vmatprep.subr.mxu0 0.0
    %330 = vmatpush1.xpose.msra.mxu0 0.0
    %331 = vmatprep.subr.mxu0 0.0
    %332 = vmatpush1.xpose.msra.mxu0 0.0
    %333 = vmatprep.subr.mxu0 0.0
    %334 = vmatpush1.xpose.msra.mxu0 0.0
    %335 = vmatprep.subr.mxu0 0.0
    %336 = vmatpush1.xpose.msra.mxu0 0.0
    %337 = vmatprep.subr.mxu0 0.0
    %338 = vmatpush1.xpose.msra.mxu0 0.0
    %339 = vmatprep.subr.mxu0 0.0
    %340 = vmatpush1.xpose.msra.mxu0 0.0
    %341 = vmatprep.subr.mxu0 0.0
    %342 = vmatpush1.xpose.msra.mxu0 0.0
    %343 = vmatprep.subr.mxu0 0.0
    %344 = vmatpush1.xpose.msra.mxu0 0.0
    %345 = vmatprep.subr.mxu0 0.0
    %346 = vmatpush1.xpose.msra.mxu0 0.0
    %347 = vmatprep.subr.mxu0 0.0
    %348 = vmatpush1.xpose.msra.mxu0 0.0
    %349 = vmatprep.subr.mxu0 0.0
    %350 = vmatpush1.xpose.msra.mxu0 0.0
    %351 = vmatprep.subr.mxu0 0.0
    %352 = vmatpush1.xpose.msra.mxu0 0.0
    %353 = vmatprep.subr.mxu0 0.0
    %354 = vmatpush1.xpose.msra.mxu0 0.0
    %355 = vmatprep.subr.mxu0 0.0
    %356 = vmatpush1.xpose.msra.mxu0 0.0
    %357 = vmatprep.subr.mxu0 0.0
    %358 = vmatpush1.xpose.msra.mxu0 0.0
    %359 = vmatprep.subr.mxu0 0.0
    %360 = vmatpush1.xpose.msra.mxu0 0.0
    %361 = vmatprep.mubr.f32.mxu0 %v47
    %362 = vmatmul.mubr.f32.gmra.mrb[0].mxu0 %v46
    %v363 = vpop.f32.mrb[0].mxu0
    %v364 = vadd.f32 %v294, %v363
    %v365 = vpop.f32.mrb[0].mxu0
    %366 = vdwg.mxu0
    %367 = vmatprep.subr.mxu0 %v62
    %368 = vmatpush1.xpose.msra.mxu0 %v61
    %369 = vmatprep.subr.mxu0 %v75
    %370 = vmatpush1.xpose.msra.mxu0 %v74
    %371 = vmatprep.subr.mxu0 %v88
    %372 = vmatpush1.xpose.msra.mxu0 %v87
    %373 = vmatprep.subr.mxu0 %v101
    %374 = vmatpush1.xpose.msra.mxu0 %v100
    %375 = vmatprep.subr.mxu0 %v114
    %376 = vmatpush1.xpose.msra.mxu0 %v113
    %377 = vmatprep.subr.mxu0 %v127
    %378 = vmatpush1.xpose.msra.mxu0 %v126
    %379 = vmatprep.subr.mxu0 0.0
    %380 = vmatpush1.xpose.msra.mxu0 0.0
    %381 = vmatprep.subr.mxu0 0.0
    %382 = vmatpush1.xpose.msra.mxu0 0.0
    %383 = vmatprep.subr.mxu0 0.0
    %384 = vmatpush1.xpose.msra.mxu0 0.0
    %385 = vmatprep.subr.mxu0 0.0
    %386 = vmatpush1.xpose.msra.mxu0 0.0
    %387 = vmatprep.subr.mxu0 0.0
    %388 = vmatpush1.xpose.msra.mxu0 0.0
    %389 = vmatprep.subr.mxu0 0.0
    %390 = vmatpush1.xpose.msra.mxu0 0.0
    %391 = vmatprep.subr.mxu0 0.0
    %392 = vmatpush1.xpose.msra.mxu0 0.0
    %393 = vmatprep.subr.mxu0 0.0
    %394 = vmatpush1.xpose.msra.mxu0 0.0
    %395 = vmatprep.subr.mxu0 0.0
    %396 = vmatpush1.xpose.msra.mxu0 0.0
    %397 = vmatprep.subr.mxu0 0.0
    %398 = vmatpush1.xpose.msra.mxu0 0.0
    %399 = vmatprep.subr.mxu0 0.0
    %400 = vmatpush1.xpose.msra.mxu0 0.0
    %401 = vmatprep.subr.mxu0 0.0
    %402 = vmatpush1.xpose.msra.mxu0 0.0
    %403 = vmatprep.subr.mxu0 0.0
    %404 = vmatpush1.xpose.msra.mxu0 0.0
    %405 = vmatprep.subr.mxu0 0.0
    %406 = vmatpush1.xpose.msra.mxu0 0.0
    %407 = vmatprep.subr.mxu0 0.0
    %408 = vmatpush1.xpose.msra.mxu0 0.0
    %409 = vmatprep.subr.mxu0 0.0
    %410 = vmatpush1.xpose.msra.mxu0 0.0
    %411 = vmatprep.subr.mxu0 0.0
    %412 = vmatpush1.xpose.msra.mxu0 0.0
    %413 = vmatprep.subr.mxu0 0.0
    %414 = vmatpush1.xpose.msra.mxu0 0.0
    %415 = vmatprep.subr.mxu0 0.0
    %416 = vmatpush1.xpose.msra.mxu0 0.0
    %417 = vmatprep.subr.mxu0 0.0
    %418 = vmatpush1.xpose.msra.mxu0 0.0
    %419 = vmatprep.subr.mxu0 0.0
    %420 = vmatpush1.xpose.msra.mxu0 0.0
    %421 = vmatprep.subr.mxu0 0.0
    %422 = vmatpush1.xpose.msra.mxu0 0.0
    %423 = vmatprep.subr.mxu0 0.0
    %424 = vmatpush1.xpose.msra.mxu0 0.0
    %425 = vmatprep.subr.mxu0 0.0
    %426 = vmatpush1.xpose.msra.mxu0 0.0
    %427 = vmatprep.subr.mxu0 0.0
    %428 = vmatpush1.xpose.msra.mxu0 0.0
    %429 = vmatprep.subr.mxu0 0.0
    %430 = vmatpush1.xpose.msra.mxu0 0.0
    %431 = vmatprep.mubr.f32.mxu0 %v49
    %432 = vmatmul.mubr.f32.gmra.mrb[0].mxu0 %v48
    %v433 = vpop.f32.mrb[0].mxu0
    %v434 = vadd.f32 %v364, %v433
    %v435 = vpop.f32.mrb[0].mxu0
    %436 = vdwg.mxu0
    %437 = vmatprep.subr.mxu0 %v64
    %438 = vmatpush1.xpose.msra.mxu0 %v63
    %439 = vmatprep.subr.mxu0 %v77
    %440 = vmatpush1.xpose.msra.mxu0 %v76
    %441 = vmatprep.subr.mxu0 %v90
    %442 = vmatpush1.xpose.msra.mxu0 %v89
    %443 = vmatprep.subr.mxu0 %v103
    %444 = vmatpush1.xpose.msra.mxu0 %v102
    %445 = vmatprep.subr.mxu0 %v116
    %446 = vmatpush1.xpose.msra.mxu0 %v115
    %447 = vmatprep.subr.mxu0 %v129
    %448 = vmatpush1.xpose.msra.mxu0 %v128
    %449 = vmatprep.subr.mxu0 0.0
    %450 = vmatpush1.xpose.msra.mxu0 0.0
    %451 = vmatprep.subr.mxu0 0.0
    %452 = vmatpush1.xpose.msra.mxu0 0.0
    %453 = vmatprep.subr.mxu0 0.0
    %454 = vmatpush1.xpose.msra.mxu0 0.0
    %455 = vmatprep.subr.mxu0 0.0
    %456 = vmatpush1.xpose.msra.mxu0 0.0
    %457 = vmatprep.subr.mxu0 0.0
    %458 = vmatpush1.xpose.msra.mxu0 0.0
    %459 = vmatprep.subr.mxu0 0.0
    %460 = vmatpush1.xpose.msra.mxu0 0.0
    %461 = vmatprep.subr.mxu0 0.0
    %462 = vmatpush1.xpose.msra.mxu0 0.0
    %463 = vmatprep.subr.mxu0 0.0
    %464 = vmatpush1.xpose.msra.mxu0 0.0
    %465 = vmatprep.subr.mxu0 0.0
    %466 = vmatpush1.xpose.msra.mxu0 0.0
    %467 = vmatprep.subr.mxu0 0.0
    %468 = vmatpush1.xpose.msra.mxu0 0.0
    %469 = vmatprep.subr.mxu0 0.0
    %470 = vmatpush1.xpose.msra.mxu0 0.0
    %471 = vmatprep.subr.mxu0 0.0
    %472 = vmatpush1.xpose.msra.mxu0 0.0
    %473 = vmatprep.subr.mxu0 0.0
    %474 = vmatpush1.xpose.msra.mxu0 0.0
    %475 = vmatprep.subr.mxu0 0.0
    %476 = vmatpush1.xpose.msra.mxu0 0.0
    %477 = vmatprep.subr.mxu0 0.0
    %478 = vmatpush1.xpose.msra.mxu0 0.0
    %479 = vmatprep.subr.mxu0 0.0
    %480 = vmatpush1.xpose.msra.mxu0 0.0
    %481 = vmatprep.subr.mxu0 0.0
    %482 = vmatpush1.xpose.msra.mxu0 0.0
    %483 = vmatprep.subr.mxu0 0.0
    %484 = vmatpush1.xpose.msra.mxu0 0.0
    %485 = vmatprep.subr.mxu0 0.0
    %486 = vmatpush1.xpose.msra.mxu0 0.0
    %487 = vmatprep.subr.mxu0 0.0
    %488 = vmatpush1.xpose.msra.mxu0 0.0
    %489 = vmatprep.subr.mxu0 0.0
    %490 = vmatpush1.xpose.msra.mxu0 0.0
    %491 = vmatprep.subr.mxu0 0.0
    %492 = vmatpush1.xpose.msra.mxu0 0.0
    %493 = vmatprep.subr.mxu0 0.0
    %494 = vmatpush1.xpose.msra.mxu0 0.0
    %495 = vmatprep.subr.mxu0 0.0
    %496 = vmatpush1.xpose.msra.mxu0 0.0
    %497 = vmatprep.subr.mxu0 0.0
    %498 = vmatpush1.xpose.msra.mxu0 0.0
    %499 = vmatprep.subr.mxu0 0.0
    %500 = vmatpush1.xpose.msra.mxu0 0.0
    %501 = vmatprep.mubr.f32.mxu0 %v51
    %502 = vmatmul.mubr.f32.gmra.mrb[0].mxu0 %v50
    %v503 = vpop.f32.mrb[0].mxu0
    %v504 = vadd.f32 %v434, %v503
    %v505 = vpop.f32.mrb[0].mxu0
    %506 = vdwg.mxu0
    %507 = vmatprep.subr.mxu0 %v66
    %508 = vmatpush1.xpose.msra.mxu0 %v65
    %509 = vmatprep.subr.mxu0 %v79
    %510 = vmatpush1.xpose.msra.mxu0 %v78
    %511 = vmatprep.subr.mxu0 %v92
    %512 = vmatpush1.xpose.msra.mxu0 %v91
    %513 = vmatprep.subr.mxu0 %v105
    %514 = vmatpush1.xpose.msra.mxu0 %v104
    %515 = vmatprep.subr.mxu0 %v118
    %516 = vmatpush1.xpose.msra.mxu0 %v117
    %517 = vmatprep.subr.mxu0 %v131
    %518 = vmatpush1.xpose.msra.mxu0 %v130
    %519 = vmatprep.subr.mxu0 0.0
    %520 = vmatpush1.xpose.msra.mxu0 0.0
    %521 = vmatprep.subr.mxu0 0.0
    %522 = vmatpush1.xpose.msra.mxu0 0.0
    %523 = vmatprep.subr.mxu0 0.0
    %524 = vmatpush1.xpose.msra.mxu0 0.0
    %525 = vmatprep.subr.mxu0 0.0
    %526 = vmatpush1.xpose.msra.mxu0 0.0
    %527 = vmatprep.subr.mxu0 0.0
    %528 = vmatpush1.xpose.msra.mxu0 0.0
    %529 = vmatprep.subr.mxu0 0.0
    %530 = vmatpush1.xpose.msra.mxu0 0.0
    %531 = vmatprep.subr.mxu0 0.0
    %532 = vmatpush1.xpose.msra.mxu0 0.0
    %533 = vmatprep.subr.mxu0 0.0
    %534 = vmatpush1.xpose.msra.mxu0 0.0
    %535 = vmatprep.subr.mxu0 0.0
    %536 = vmatpush1.xpose.msra.mxu0 0.0
    %537 = vmatprep.subr.mxu0 0.0
    %538 = vmatpush1.xpose.msra.mxu0 0.0
    %539 = vmatprep.subr.mxu0 0.0
    %540 = vmatpush1.xpose.msra.mxu0 0.0
    %541 = vmatprep.subr.mxu0 0.0
    %542 = vmatpush1.xpose.msra.mxu0 0.0
    %543 = vmatprep.subr.mxu0 0.0
    %544 = vmatpush1.xpose.msra.mxu0 0.0
    %545 = vmatprep.subr.mxu0 0.0
    %546 = vmatpush1.xpose.msra.mxu0 0.0
    %547 = vmatprep.subr.mxu0 0.0
    %548 = vmatpush1.xpose.msra.mxu0 0.0
    %549 = vmatprep.subr.mxu0 0.0
    %550 = vmatpush1.xpose.msra.mxu0 0.0
    %551 = vmatprep.subr.mxu0 0.0
    %552 = vmatpush1.xpose.msra.mxu0 0.0
    %553 = vmatprep.subr.mxu0 0.0
    %554 = vmatpush1.xpose.msra.mxu0 0.0
    %555 = vmatprep.subr.mxu0 0.0
    %556 = vmatpush1.xpose.msra.mxu0 0.0
    %557 = vmatprep.subr.mxu0 0.0
    %558 = vmatpush1.xpose.msra.mxu0 0.0
    %559 = vmatprep.subr.mxu0 0.0
    %560 = vmatpush1.xpose.msra.mxu0 0.0
    %561 = vmatprep.subr.mxu0 0.0
    %562 = vmatpush1.xpose.msra.mxu0 0.0
    %563 = vmatprep.subr.mxu0 0.0
    %564 = vmatpush1.xpose.msra.mxu0 0.0
    %565 = vmatprep.subr.mxu0 0.0
    %566 = vmatpush1.xpose.msra.mxu0 0.0
    %567 = vmatprep.subr.mxu0 0.0
    %568 = vmatpush1.xpose.msra.mxu0 0.0
    %569 = vmatprep.subr.mxu0 0.0
    %570 = vmatpush1.xpose.msra.mxu0 0.0
    %571 = vmatprep.mubr.f32.mxu0 %v53
    %572 = vmatmul.mubr.f32.gmra.mrb[0].mxu0 %v52
    %v573 = vpop.f32.mrb[0].mxu0
    %v574 = vadd.f32 %v504, %v573
    %v575 = vpop.f32.mrb[0].mxu0
    %576 = vdwg.mxu0
    %577 = vmatprep.subr.mxu0 0.0
    %578 = vmatpush1.xpose.msra.mxu0 %v140
    %579 = vmatprep.subr.mxu0 0.0
    %580 = vmatpush1.xpose.msra.mxu0 %v143
    %581 = vmatprep.subr.mxu0 0.0
    %582 = vmatpush1.xpose.msra.mxu0 %v146
    %583 = vmatprep.subr.mxu0 0.0
    %584 = vmatpush1.xpose.msra.mxu0 %v149
    %585 = vmatprep.subr.mxu0 0.0
    %586 = vmatpush1.xpose.msra.mxu0 %v152
    %587 = vmatprep.subr.mxu0 0.0
    %588 = vmatpush1.xpose.msra.mxu0 %v155
    %589 = vmatprep.subr.mxu0 0.0
    %590 = vmatpush1.xpose.msra.mxu0 0.0
    %591 = vmatprep.subr.mxu0 0.0
    %592 = vmatpush1.xpose.msra.mxu0 0.0
    %593 = vmatprep.subr.mxu0 0.0
    %594 = vmatpush1.xpose.msra.mxu0 0.0
    %595 = vmatprep.subr.mxu0 0.0
    %596 = vmatpush1.xpose.msra.mxu0 0.0
    %597 = vmatprep.subr.mxu0 0.0
    %598 = vmatpush1.xpose.msra.mxu0 0.0
    %599 = vmatprep.subr.mxu0 0.0
    %600 = vmatpush1.xpose.msra.mxu0 0.0
    %601 = vmatprep.subr.mxu0 0.0
    %602 = vmatpush1.xpose.msra.mxu0 0.0
    %603 = vmatprep.subr.mxu0 0.0
    %604 = vmatpush1.xpose.msra.mxu0 0.0
    %605 = vmatprep.subr.mxu0 0.0
    %606 = vmatpush1.xpose.msra.mxu0 0.0
    %607 = vmatprep.subr.mxu0 0.0
    %608 = vmatpush1.xpose.msra.mxu0 0.0
    %609 = vmatprep.subr.mxu0 0.0
    %610 = vmatpush1.xpose.msra.mxu0 0.0
    %611 = vmatprep.subr.mxu0 0.0
    %612 = vmatpush1.xpose.msra.mxu0 0.0
    %613 = vmatprep.subr.mxu0 0.0
    %614 = vmatpush1.xpose.msra.mxu0 0.0
    %615 = vmatprep.subr.mxu0 0.0
    %616 = vmatpush1.xpose.msra.mxu0 0.0
    %617 = vmatprep.subr.mxu0 0.0
    %618 = vmatpush1.xpose.msra.mxu0 0.0
    %619 = vmatprep.subr.mxu0 0.0
    %620 = vmatpush1.xpose.msra.mxu0 0.0
    %621 = vmatprep.subr.mxu0 0.0
    %622 = vmatpush1.xpose.msra.mxu0 0.0
    %623 = vmatprep.subr.mxu0 0.0
    %624 = vmatpush1.xpose.msra.mxu0 0.0
    %625 = vmatprep.subr.mxu0 0.0
    %626 = vmatpush1.xpose.msra.mxu0 0.0
    %627 = vmatprep.subr.mxu0 0.0
    %628 = vmatpush1.xpose.msra.mxu0 0.0
    %629 = vmatprep.subr.mxu0 0.0
    %630 = vmatpush1.xpose.msra.mxu0 0.0
    %631 = vmatprep.subr.mxu0 0.0
    %632 = vmatpush1.xpose.msra.mxu0 0.0
    %633 = vmatprep.subr.mxu0 0.0
    %634 = vmatpush1.xpose.msra.mxu0 0.0
    %635 = vmatprep.subr.mxu0 0.0
    %636 = vmatpush1.xpose.msra.mxu0 0.0
    %637 = vmatprep.subr.mxu0 0.0
    %638 = vmatpush1.xpose.msra.mxu0 0.0
    %639 = vmatprep.subr.mxu0 0.0
    %640 = vmatpush1.xpose.msra.mxu0 0.0
    %641 = vmatprep.mubr.f32.mxu0 0.0
    %642 = vmatmul.mubr.f32.gmra.mrb[0].mxu0 %v137
    %v643 = vpop.f32.mrb[0].mxu0
    %v644 = vadd.f32 %v574, %v643
    %v645 = vpop.f32.mrb[0].mxu0
    %646 = vdwg.mxu0
    %vm647 = vcmask 351232
    %648 = vst.msk [vmem:[#allocation8] sm:$0xff] %vm647, %v644
    // Predicated region
    $region22: #{tpu_custom_call.1} parent=1 // pred_check
      _
    $region23: #{tpu_custom_call.1} parent=1 // pred_check_branch
      %650 = sbr.rel (0) target = $region25
    $region24: #{tpu_custom_call.1} parent=1 // pred_region
      %s652 = ssub.s32 128, 128
      %653 = vsyncadd [#allocation5], %s652
      %s655 = sshll.u32 [#allocation8], 4
      %s656 = int_to_ptr.vmem [resolvable:$true] %s655
      %658 = dma.vmem_to_hbm [thread:$0]  %s656, 128, %s3, [#allocation5]
    $region25: #{tpu_custom_call.1} parent=1 // pred_fallthru
      _
    // Predicated region
    $region26: #{tpu_custom_call.1} parent=1 // pred_check
      _
    $region27: #{tpu_custom_call.1} parent=1 // pred_check_branch
      %660 = sbr.rel (0) target = $region29
    $region28: #{tpu_custom_call.1} parent=1 // pred_region
      %661 = dma.done [#allocation5], 128
    $region29: #{tpu_custom_call.1} parent=1 // pred_fallthru
      _
    %662 = vsyncpa [#allocation4], 1
    %663 = vsyncpa [#allocation7], 1
    %664 = vsyncpa [#allocation5], 1

</llo_original>
